<compile_context>
chip_gen: v5e
topology: v5e:2x2
jax: 0.10.0
libtpu: 0.0.40
codegen_flags: <defaults>
</compile_context>

<pallas_src>
import functools

import jax
import jax.numpy as jnp
from jax.experimental import pallas as pl
from jax.experimental.pallas import tpu as pltpu


def _pea_att_kernel(x_ref, w_ref, out_ref, *, num_channels, repr_dim,
                    compute_dtype):
    """One node-tile of fused channel projection + channel attention.

    x_ref   : (TN, E)        node-feature tile (f32, cast to bf16 in-kernel)
    w_ref   : (E, P)         fused weights [W_0|...|W_{C-1}|A|0-pad] (bf16)
    out_ref : (TN, R)        aggregated representation tile
    """
    # Cast on the VPU right before the MXU; x is DMA'd as f32 so no separate
    # wrapper-side cast pass over HBM is needed.
    x = x_ref[...].astype(compute_dtype)                             # (TN, E)

    # Single fused MXU call for all channel outputs AND the attention scores.
    h = jnp.dot(x, w_ref[...],
                preferred_element_type=jnp.float32)                  # (TN, P) f32

    cr = num_channels * repr_dim
    scores = h[:, cr:cr + num_channels]                              # (TN, C)

    # Softmax over channels (dim=-1 in the torch code), max-subtracted.
    # Garbage rows of a ragged last block may go NaN/Inf here; rows are
    # independent and their output rows are masked on store, so this is safe.
    m = jnp.max(scores, axis=-1, keepdims=True)                      # (TN, 1)
    e = jnp.exp(scores - m)                                          # (TN, C)
    denom = jnp.sum(e, axis=-1, keepdims=True)                       # (TN, 1)
    p = e * pl.reciprocal(denom, approx=True)                        # (TN, C)

    # Attention-weighted sum over channels, accumulated on the fly.
    out = p[:, 0:1] * h[:, 0:repr_dim]
    for c in range(1, num_channels):
        out = out + p[:, c:c + 1] * h[:, c * repr_dim:(c + 1) * repr_dim]

    out_ref[...] = out.astype(out_ref.dtype)


def pea_forward_att(x, channel_weights, att, *, tile_n=1024,
                    compute_dtype=jnp.bfloat16, out_dtype=jnp.float32):
    """x: (N, E) f32, channel_weights: (C, E, R), att: (C, R) -> (N, R)."""
    n, e = x.shape
    c, e2, r = channel_weights.shape
    assert e == e2 and att.shape == (c, r)

    # One-time (tiny) weight prep: fuse all channel projections and the folded
    # channel-attention scores into a single lane-dense RHS.
    #   W_big = [W_0 | ... | W_{C-1} | A | 0-pad],   A[:, c] = W_c @ att_c
    w_all = jnp.transpose(channel_weights, (1, 0, 2)).reshape(e, c * r)
    a_all = jnp.einsum("cer,cr->ec", channel_weights, att)
    cols = c * r + c
    cols_pad = ((cols + 127) // 128) * 128
    w_big = jnp.concatenate(
        [w_all, a_all, jnp.zeros((e, cols_pad - cols), w_all.dtype)], axis=1)
    w_big = w_big.astype(compute_dtype)

    # Grid depth: aim for >= 4 steps (>= 2 per v7x TensorCore) when N allows,
    # but never shrink tiles below 256 rows (per-step overhead dominates).
    while pl.cdiv(n, tile_n) < 4 and tile_n > 256:
        tile_n //= 2
    num_tiles = pl.cdiv(n, tile_n)

    kernel = functools.partial(_pea_att_kernel, num_channels=c, repr_dim=r,
                               compute_dtype=compute_dtype)
    return pl.pallas_call(
        kernel,
        out_shape=jax.ShapeDtypeStruct((n, r), out_dtype),
        grid_spec=pltpu.PrefetchScalarGridSpec(
            num_scalar_prefetch=0,
            grid=(num_tiles,),
            in_specs=[
                pl.BlockSpec((tile_n, e), lambda i: (i, 0)),
                pl.BlockSpec((e, cols_pad), lambda i: (0, 0)),
            ],
            out_specs=pl.BlockSpec((tile_n, r), lambda i: (i, 0)),
        ),
        compiler_params=pltpu.CompilerParams(
            dimension_semantics=("parallel",),
        ),
    )(x, w_big)


def _reference(x, channel_weights, att):
    # Pure-JAX reference of the same forward pass ('att' branch).
    h = jnp.einsum("ne,cer->ncr", x, channel_weights)            # (N, C, R)
    scores = jnp.sum(h * att[None, :, :], axis=-1)               # (N, C)
    atts = jax.nn.softmax(scores, axis=-1)[..., None]            # (N, C, 1)
    return jnp.sum(h * atts, axis=1)                             # (N, R)


def _glorot(key, shape):
    fan_in, fan_out = shape[-2], shape[-1]
    limit = jnp.sqrt(6.0 / (fan_in + fan_out))
    return jax.random.uniform(key, shape, jnp.float32, -limit, limit)


if __name__ == "__main__":
    # Small, module-consistent shapes.  N is intentionally NOT a multiple of
    # the tile so the ragged-last-block / masked-store path is exercised;
    # repr_dim = 128 keeps the output store lane-dense.
    NUM_NODES = 1000     # dataset['num_nodes']
    EMB_DIM = 32         # emb_dim
    REPR_DIM = 128       # repr_dim (multiple of 128 -> unmasked stores)
    NUM_CHANNELS = 3     # len(meta_path_steps)

    key = jax.random.PRNGKey(0)
    kx, kw, ka = jax.random.split(key, 3)

    # self.x (glorot in reset_parameters)
    x = _glorot(kx, (NUM_NODES, EMB_DIM))
    # stand-in per-channel projection weights (channel_class modules)
    w = jnp.stack(
        [_glorot(k, (EMB_DIM, REPR_DIM)) for k in jax.random.split(kw, NUM_CHANNELS)]
    )
    # self.att : (1, C, R) -> stored as (C, R)
    att = _glorot(ka, (NUM_CHANNELS, REPR_DIM))

    out = pea_forward_att(x, w, att)
    out = jax.block_until_ready(out)

    # Reference with the same bf16-quantized parameters (kernel uses bf16 MXU
    # inputs with f32 accumulation), isolating kernel error.
    x_q = x.astype(jnp.bfloat16).astype(jnp.float32)
    w_q = w.astype(jnp.bfloat16).astype(jnp.float32)
    att_q = att.astype(jnp.bfloat16).astype(jnp.float32)
    ref = _reference(x_q, w_q, att_q)

    assert out.shape == (NUM_NODES, REPR_DIM)
    assert bool(jnp.all(jnp.isfinite(out))), "non-finite values in output"
    assert jnp.allclose(out, ref, atol=1e-2, rtol=1e-2), "mismatch vs reference"

    print("KERNEL_OK")
</pallas_src>

<mosaic_0001>
module attributes {stable_mosaic.version = 11 : i64} {
  func.func @_pea_att_kernel(%arg0: i32, %arg1: memref<256x32xf32, #tpu.memory_space<vmem>>, %arg2: memref<32x512xbf16, #tpu.memory_space<vmem>>, %arg3: memref<256x128xf32, #tpu.memory_space<vmem>>) attributes {dimension_semantics = [#tpu.dimension_semantics<parallel>], iteration_bounds = array<i64: 4>, scalar_prefetch = 0 : i64, scratch_operands = 0 : i64, tpu.core_type = #tpu.core_type<tc>, window_params = [{transform_indices = @transform_0, window_bounds = array<i64: 256, 32>}, {pipeline_mode = #tpu.pipeline_mode<synchronous>, transform_indices = @transform_1, window_bounds = array<i64: 32, 512>}, {transform_indices = @transform_2, window_bounds = array<i64: 256, 128>}]} {
    %c0 = arith.constant 0 : index
    %c0_0 = arith.constant 0 : index
    %0 = vector.load %arg1[%c0, %c0_0] : memref<256x32xf32, #tpu.memory_space<vmem>>, vector<256x32xf32>
    %1 = arith.truncf %0 : vector<256x32xf32> to vector<256x32xbf16>
    %c0_1 = arith.constant 0 : index
    %c0_2 = arith.constant 0 : index
    %2 = vector.load %arg2[%c0_1, %c0_2] : memref<32x512xbf16, #tpu.memory_space<vmem>>, vector<32x512xbf16>
    %cst = arith.constant dense<0.000000e+00> : vector<256x512xf32>
    %3 = tpu.matmul %1, %2, %cst {dimension_numbers = #tpu.dot_dimension_numbers<[1], [0], [0], [1], [0, 0, 1, 1], [], []>} : vector<256x32xbf16>, vector<32x512xbf16>, vector<256x512xf32> -> vector<256x512xf32>
    %4 = vector.extract_strided_slice %3 {offsets = [0, 384], sizes = [256, 3], strides = [1, 1]} : vector<256x512xf32> to vector<256x3xf32>
    %cst_3 = arith.constant dense<0xFF800000> : vector<256xf32>
    %5 = vector.multi_reduction <maximumf>, %4, %cst_3 [1] : vector<256x3xf32> to vector<256xf32>
    %6 = vector.shape_cast %5 : vector<256xf32> to vector<256x1xf32>
    %7 = vector.broadcast %6 : vector<256x1xf32> to vector<256x3xf32>
    %8 = arith.subf %4, %7 : vector<256x3xf32>
    %9 = math.exp %8 : vector<256x3xf32>
    %cst_4 = arith.constant dense<0.000000e+00> : vector<256xf32>
    %10 = vector.multi_reduction <add>, %9, %cst_4 [1] : vector<256x3xf32> to vector<256xf32>
    %11 = vector.shape_cast %10 : vector<256xf32> to vector<256x1xf32>
    %12 = tpu.reciprocal %11 {approx = true} : vector<256x1xf32> -> vector<256x1xf32>
    %13 = vector.broadcast %12 : vector<256x1xf32> to vector<256x3xf32>
    %14 = arith.mulf %9, %13 : vector<256x3xf32>
    %15 = vector.extract_strided_slice %14 {offsets = [0, 0], sizes = [256, 1], strides = [1, 1]} : vector<256x3xf32> to vector<256x1xf32>
    %16 = vector.extract_strided_slice %3 {offsets = [0, 0], sizes = [256, 128], strides = [1, 1]} : vector<256x512xf32> to vector<256x128xf32>
    %17 = vector.broadcast %15 : vector<256x1xf32> to vector<256x128xf32>
    %18 = arith.mulf %17, %16 : vector<256x128xf32>
    %19 = vector.extract_strided_slice %14 {offsets = [0, 1], sizes = [256, 1], strides = [1, 1]} : vector<256x3xf32> to vector<256x1xf32>
    %20 = vector.extract_strided_slice %3 {offsets = [0, 128], sizes = [256, 128], strides = [1, 1]} : vector<256x512xf32> to vector<256x128xf32>
    %21 = vector.broadcast %19 : vector<256x1xf32> to vector<256x128xf32>
    %22 = arith.mulf %21, %20 : vector<256x128xf32>
    %23 = arith.addf %18, %22 : vector<256x128xf32>
    %24 = vector.extract_strided_slice %14 {offsets = [0, 2], sizes = [256, 1], strides = [1, 1]} : vector<256x3xf32> to vector<256x1xf32>
    %25 = vector.extract_strided_slice %3 {offsets = [0, 256], sizes = [256, 128], strides = [1, 1]} : vector<256x512xf32> to vector<256x128xf32>
    %26 = vector.broadcast %24 : vector<256x1xf32> to vector<256x128xf32>
    %27 = arith.mulf %26, %25 : vector<256x128xf32>
    %28 = arith.addf %23, %27 : vector<256x128xf32>
    %c0_5 = arith.constant 0 : index
    %c0_6 = arith.constant 0 : index
    %29 = vector.load %arg3[%c0_5, %c0_6] : memref<256x128xf32, #tpu.memory_space<vmem>>, vector<256x128xf32>
    tpu.vector_store %arg3[%c0_5, %c0_6], %28 {strides = array<i32>} : memref<256x128xf32, #tpu.memory_space<vmem>>, vector<256x128xf32>,
    return
  }
  func.func @transform_0(%arg0: i32) -> (i32, i32) {
    %c0_i32 = arith.constant 0 : i32
    %c0_i32_0 = arith.constant 0 : i32
    return %arg0, %c0_i32 : i32, i32
  }
  func.func @transform_1(%arg0: i32) -> (i32, i32) {
    %c0_i32 = arith.constant 0 : i32
    %c0_i32_0 = arith.constant 0 : i32
    %c0_i32_1 = arith.constant 0 : i32
    return %c0_i32, %c0_i32_0 : i32, i32
  }
  func.func @transform_2(%arg0: i32) -> (i32, i32) {
    %c0_i32 = arith.constant 0 : i32
    %c0_i32_0 = arith.constant 0 : i32
    return %arg0, %c0_i32 : i32, i32
  }
}

</mosaic_0001>

<llo_original>
// kernel: tpu_custom_call.1
$region0: #{tpu_custom_call.1}
  #allocation0 [shape = 'u32[]', space=smem, size = 0x4, offset = 0x4, fixed_abs, tag = 'smem constant byte address 0x4 - core index']
  #allocation1 [shape = 'u32[72,128]{1,0:T(1,128)}', space=vmem, size = 0x9000, scoped, tag = 'internal scratch']
  %s0 = inlined_call_operand.vmem [shape: f32[1000,32], index: 0, kind: input, shape index: {}]
  %s1 = inlined_call_operand.vmem [shape: bf16[32,512], index: 1, kind: input, shape index: {}]
  %s2 = inlined_call_operand.hbm [shape: f32[1000,128], index: 2, kind: output, shape index: {}]
  %s3 = sld [smem:[#allocation0]]
  $region41: #{tpu_custom_call.1} parent=0
    _
  %s5 = ssub.s32 1, %s3
  %s6 = scalar_select 0, %s5, %s3
  $region1: #{tpu_custom_call.1} parent=0
    #allocation2 [shape = 'u8[262144]{0}', space=vmem, size = 0x40000, scoped, tag = 'output window, operand 0']
    #allocation3 [shape = 's32[2]{0}', space=sflag, size = 0x8, scoped, tag = 'scoped memory for tpu_custom_call.1']
    %7 = vsyncpa [#allocation3], 0
    %s8 = scalar_lea.sflag [#allocation3], 1
    %9 = vsyncpa %s8, 0
    loop: start=0, step=1, limit=6
    $region2: #{tpu_custom_call.1} parent=1 // loop_pre_header
      _
    $region3: #{tpu_custom_call.1} parent=1 // loop_header
      %s11 = sphi 0, %s15
      %p12 = scmp.ge.s32.totalorder %s11, 6
      %s21 = sphi 0, %s23
      %s24 = sphi 0, %s21
      %s25 = sphi 0, %s24
      %s41 = sphi 0, %s25
      %s45 = sphi 0, %s45
      %s47 = sphi 0, %s45
      %s48 = sphi 0, %s47
      %s62 = sphi 0, %s48
      %s68 = sphi 0, %s70
      %s71 = sphi 0, %s68
      %s72 = sphi 0, %s71
      %s88 = sphi 0, %s72
    $region4: #{tpu_custom_call.1} parent=1 // loop_header_branch
      %14 = sbr.rel (%p12) target = $region8
    $region5: #{tpu_custom_call.1} parent=1 // loop_body
      %s16 = ssub.s32 %s11, 1
      %s17 = ssub.s32 %s11, 2
      %s18 = sadd.s32 %s11, 1
      %s19 = ssub.s32 %s11, %s18
      %p20 = scmp.eq.s32.totalorder %s19, 0
      %s22 = sadd.s32 %s21, 1
      %s23 = scalar_select %p20, %s21, %s22
      %p26 = pneg %p20
      %p27 = scmp.eq.s32.totalorder %s11, 3
      %p28 = por %p26, %p27
      %p29 = scmp.ne.s32.totalorder %s21, %s24
      %p30 = scmp.eq.s32.totalorder %s11, 0
      %p31 = por %p29, %p30
      %p32 = scmp.ne.s32.totalorder %s21, %s24
      %p33 = scmp.eq.s32.totalorder %s16, 3
      %p34 = por %p32, %p33
      %p35 = scmp.ne.s32.totalorder %s24, %s25
      %p36 = scmp.eq.s32.totalorder %s16, 0
      %p37 = por %p35, %p36
      %p38 = scmp.ne.s32.totalorder %s24, %s25
      %p39 = scmp.eq.s32.totalorder %s17, 3
      %p40 = por %p38, %p39
      %p42 = scmp.ne.s32.totalorder %s25, %s41
      %p43 = scmp.eq.s32.totalorder %s17, 0
      %p44 = por %p42, %p43
      %s46 = sadd.s32 %s45, 1
      %p49 = scmp.eq.s32.totalorder %s11, 3
      %p50 = scmp.ne.s32.totalorder %s45, %s47
      %p51 = scmp.eq.s32.totalorder %s11, 0
      %p52 = por %p50, %p51
      %p53 = scmp.ne.s32.totalorder %s45, %s47
      %p54 = scmp.eq.s32.totalorder %s16, 3
      %p55 = por %p53, %p54
      %p56 = scmp.ne.s32.totalorder %s47, %s48
      %p57 = scmp.eq.s32.totalorder %s16, 0
      %p58 = por %p56, %p57
      %p59 = scmp.ne.s32.totalorder %s47, %s48
      %p60 = scmp.eq.s32.totalorder %s17, 3
      %p61 = por %p59, %p60
      %p63 = scmp.ne.s32.totalorder %s48, %s62
      %p64 = scmp.eq.s32.totalorder %s17, 0
      %p65 = por %p63, %p64
      %s66 = ssub.s32 %s11, %s18
      %p67 = scmp.eq.s32.totalorder %s66, 0
      %s69 = sadd.s32 %s68, 1
      %s70 = scalar_select %p67, %s68, %s69
      %p73 = pneg %p67
      %p74 = scmp.eq.s32.totalorder %s11, 3
      %p75 = por %p73, %p74
      %p76 = scmp.ne.s32.totalorder %s68, %s71
      %p77 = scmp.eq.s32.totalorder %s11, 0
      %p78 = por %p76, %p77
      %p79 = scmp.ne.s32.totalorder %s68, %s71
      %p80 = scmp.eq.s32.totalorder %s16, 3
      %p81 = por %p79, %p80
      %p82 = scmp.ne.s32.totalorder %s71, %s72
      %p83 = scmp.eq.s32.totalorder %s16, 0
      %p84 = por %p82, %p83
      %p85 = scmp.ne.s32.totalorder %s71, %s72
      %p86 = scmp.eq.s32.totalorder %s17, 3
      %p87 = por %p85, %p86
      %p89 = scmp.ne.s32.totalorder %s72, %s88
      %p90 = scmp.eq.s32.totalorder %s17, 0
      %p91 = por %p89, %p90
      %p92 = scmp.le.s32.totalorder 1, %s11
      %p93 = scmp.lt.s32.totalorder %s11, 5
      %p94 = pnand %p92, %p93
      %p95 = pneg %p94
      // Predicated region
      $region9: #{tpu_custom_call.1} parent=5 // pred_check
        _
      $region10: #{tpu_custom_call.1} parent=5 // pred_check_branch
        %97 = sbr.rel (%p94) target = $region12
      $region11: #{tpu_custom_call.1} parent=5 // pred_region
        %s98 = ssub.s32 %s11, 1
        // Predicated region
        $region13: #{tpu_custom_call.1} parent=11 // pred_check
          %p99 = pneg %p58
        $region14: #{tpu_custom_call.1} parent=11 // pred_check_branch
          %101 = sbr.rel (%p99) target = $region16
        $region15: #{tpu_custom_call.1} parent=11 // pred_region
          _
        $region16: #{tpu_custom_call.1} parent=11 // pred_fallthru
          _
      $region12: #{tpu_custom_call.1} parent=5 // pred_fallthru
        _
      %p102 = scmp.lt.s32.totalorder %s11, 4
      // Predicated region
      $region17: #{tpu_custom_call.1} parent=5 // pred_check
        %p103 = pneg %p102
      $region18: #{tpu_custom_call.1} parent=5 // pred_check_branch
        %105 = sbr.rel (%p103) target = $region20
      $region19: #{tpu_custom_call.1} parent=5 // pred_region
        // Predicated region
        $region21: #{tpu_custom_call.1} parent=19 // pred_check
          %p106 = pneg %p31
        $region22: #{tpu_custom_call.1} parent=19 // pred_check_branch
          %108 = sbr.rel (%p106) target = $region24
        $region23: #{tpu_custom_call.1} parent=19 // pred_region
          %s109 = smul.u32 32, %s11
          %s110 = ssub.s32 125, %s109
          %p111 = scmp.lt.s32.totalorder %s110, 32
          %s112 = scalar_select %p111, %s110, 32
          %s113 = smul.u32 8, %s112
          %p114 = scmp.lt.s32.totalorder %s109, 124
          %s115 = scalar_select %p114, %s109, 124
          %s116 = smul.addr %s115, 8
          %s117 = scalar_lea.vmem %s0, %s116
          %s118 = smul.u32 32, %s11
          %s119 = ssub.s32 125, %s118
          %p120 = scmp.lt.s32.totalorder %s119, 32
          %s121 = scalar_select %p120, %s119, 32
          %s122 = smul.u32 8, %s121
        $region24: #{tpu_custom_call.1} parent=19 // pred_fallthru
          _
      $region20: #{tpu_custom_call.1} parent=5 // pred_fallthru
        _
      %p123 = scmp.le.s32.totalorder 1, %s11
      %p124 = scmp.lt.s32.totalorder %s11, 5
      %p125 = pnand %p123, %p124
      %p126 = pneg %p125
      // Predicated region
      $region25: #{tpu_custom_call.1} parent=5 // pred_check
        _
      $region26: #{tpu_custom_call.1} parent=5 // pred_check_branch
        %128 = sbr.rel (%p125) target = $region28
      $region27: #{tpu_custom_call.1} parent=5 // pred_region
        %s129 = ssub.s32 %s11, 1
        %s130 = smul.u32 32, %s16
        %s131 = ssub.s32 125, %s130
        %p132 = scmp.lt.s32.totalorder %s131, 32
        %s133 = scalar_select %p132, %s131, 32
        %s134 = smul.u32 8, %s133
        %p135 = scmp.lt.s32.totalorder %s130, 124
        %s136 = scalar_select %p135, %s130, 124
        %s137 = smul.addr %s136, 8
        %s138 = scalar_lea.vmem %s0, %s137
        %p139 = pneg %p37
        %p140 = pneg %p34
        %p141 = pneg %p58
        %p142 = pneg %p55
        %p143 = pneg %p84
        %p144 = pneg %p81
        %s145 = sand.u32 %s71, 1
        %s146 = scalar_lea.sflag [#allocation3], %s145
        %s147 = sand.u32 %s71, 1
        %s148 = smul.addr %s147, 256
        %s149 = scalar_lea.vmem [#allocation2], %s148
        %s150 = smul.u32 32, %s16
        %s151 = ssub.s32 125, %s150
        %p152 = scmp.lt.s32.totalorder %s151, 32
        %s153 = scalar_select %p152, %s151, 32
        %s154 = smul.u32 8, %s153
        %p155 = scmp.lt.s32.totalorder %s150, 124
        %s156 = scalar_select %p155, %s150, 124
        %s157 = smul.addr %s156, 8
        %s158 = scalar_lea.vmem %s0, %s157
        %s159 = smul.u32 32, %s16
        %s160 = ssub.s32 125, %s159
        %p161 = scmp.lt.s32.totalorder %s160, 32
        %s162 = scalar_select %p161, %s160, 32
        %s163 = smul.u32 8, %s162
        %s164 = smul.u32 32, %s16
        %s165 = ssub.s32 125, %s164
        %p166 = scmp.lt.s32.totalorder %s165, 32
        %s167 = scalar_select %p166, %s165, 32
        %s168 = smul.u32 8, %s167
        %v170 = vld [vmem:[%s158] sm:$0xff]
        %v171 = vld [vmem:[%s158 + $0x8] sm:$0xff]
        %v172 = vld [vmem:[%s158 + $0x10] sm:$0xff]
        %v173 = vld [vmem:[%s158 + $0x18] sm:$0xff]
        %v174 = vld [vmem:[%s158 + $0x20] sm:$0xff]
        %v175 = vld [vmem:[%s158 + $0x28] sm:$0xff]
        %v176 = vld [vmem:[%s158 + $0x30] sm:$0xff]
        %v177 = vld [vmem:[%s158 + $0x38] sm:$0xff]
        %v178 = vld [vmem:[%s158 + $0x40] sm:$0xff]
        %v179 = vld [vmem:[%s158 + $0x48] sm:$0xff]
        %v180 = vld [vmem:[%s158 + $0x50] sm:$0xff]
        %v181 = vld [vmem:[%s158 + $0x58] sm:$0xff]
        %v182 = vld [vmem:[%s158 + $0x60] sm:$0xff]
        %v183 = vld [vmem:[%s158 + $0x68] sm:$0xff]
        %v184 = vld [vmem:[%s158 + $0x70] sm:$0xff]
        %v185 = vld [vmem:[%s158 + $0x78] sm:$0xff]
        %v186 = vld [vmem:[%s158 + $0x80] sm:$0xff]
        %v187 = vld [vmem:[%s158 + $0x88] sm:$0xff]
        %v188 = vld [vmem:[%s158 + $0x90] sm:$0xff]
        %v189 = vld [vmem:[%s158 + $0x98] sm:$0xff]
        %v190 = vld [vmem:[%s158 + $0xa0] sm:$0xff]
        %v191 = vld [vmem:[%s158 + $0xa8] sm:$0xff]
        %v192 = vld [vmem:[%s158 + $0xb0] sm:$0xff]
        %v193 = vld [vmem:[%s158 + $0xb8] sm:$0xff]
        %v194 = vld [vmem:[%s158 + $0xc0] sm:$0xff]
        %v195 = vld [vmem:[%s158 + $0xc8] sm:$0xff]
        %v196 = vld [vmem:[%s158 + $0xd0] sm:$0xff]
        %v197 = vld [vmem:[%s158 + $0xd8] sm:$0xff]
        %v198 = vld [vmem:[%s158 + $0xe0] sm:$0xff]
        %v199 = vld [vmem:[%s158 + $0xe8] sm:$0xff]
        %v200 = vld [vmem:[%s158 + $0xf0] sm:$0xff]
        %v201 = vld [vmem:[%s158 + $0xf8] sm:$0xff]
        %v202 = vpack.c.bf16 %v171, %v170
        %v203 = vpack.c.bf16 %v173, %v172
        %v204 = vpack.c.bf16 %v175, %v174
        %v205 = vpack.c.bf16 %v177, %v176
        %v206 = vpack.c.bf16 %v179, %v178
        %v207 = vpack.c.bf16 %v181, %v180
        %v208 = vpack.c.bf16 %v183, %v182
        %v209 = vpack.c.bf16 %v185, %v184
        %v210 = vpack.c.bf16 %v187, %v186
        %v211 = vpack.c.bf16 %v189, %v188
        %v212 = vpack.c.bf16 %v191, %v190
        %v213 = vpack.c.bf16 %v193, %v192
        %v214 = vpack.c.bf16 %v195, %v194
        %v215 = vpack.c.bf16 %v197, %v196
        %v216 = vpack.c.bf16 %v199, %v198
        %v217 = vpack.c.bf16 %v201, %v200
        %v218 = vld [vmem:[%s1] sm:$0xff]
        %v219 = vld [vmem:[%s1 + $0x8] sm:$0xff]
        %v220 = vld [vmem:[%s1 + $0x10] sm:$0xff]
        %v221 = vld [vmem:[%s1 + $0x18] sm:$0xff]
        %v222 = vld [vmem:[%s1 + $0x20] sm:$0xff]
        %v223 = vld [vmem:[%s1 + $0x28] sm:$0xff]
        %v224 = vld [vmem:[%s1 + $0x30] sm:$0xff]
        %v225 = vld [vmem:[%s1 + $0x38] sm:$0xff]
        %v234 = vunpack.c.l.b16 %v218
        %v235 = vunpack.c.h.b16 %v218
        %v236 = vunpack.c.l.b16 %v219
        %v237 = vunpack.c.h.b16 %v219
        %v238 = vunpack.c.l.b16 %v220
        %v239 = vunpack.c.h.b16 %v220
        %v240 = vunpack.c.l.b16 %v221
        %v241 = vunpack.c.h.b16 %v221
        %v242 = vunpack.c.l.b16 %v222
        %v243 = vunpack.c.h.b16 %v222
        %v244 = vunpack.c.l.b16 %v223
        %v245 = vunpack.c.h.b16 %v223
        %v246 = vunpack.c.l.b16 %v224
        %v247 = vunpack.c.h.b16 %v224
        %v248 = vunpack.c.l.b16 %v225
        %v249 = vunpack.c.h.b16 %v225
        %v250 = vpack.c.b16 %v238, %v234
        %v251 = vpack.c.b16 %v239, %v235
        %v252 = vpack.c.b16 %v240, %v236
        %v253 = vpack.c.b16 %v241, %v237
        %v254 = vpack.c.b16 %v246, %v242
        %v255 = vpack.c.b16 %v247, %v243
        %v256 = vpack.c.b16 %v248, %v244
        %v257 = vpack.c.b16 %v249, %v245
        %vm266 = vcmask 261120
        %v268 = vsel %vm266, %v202, 0
        %v271 = vsel %vm266, %v203, 0
        %v274 = vsel %vm266, %v204, 0
        %v277 = vsel %vm266, %v205, 0
        %v280 = vsel %vm266, %v206, 0
        %v283 = vsel %vm266, %v207, 0
        %v286 = vsel %vm266, %v208, 0
        %v289 = vsel %vm266, %v209, 0
        %v292 = vsel %vm266, %v210, 0
        %v295 = vsel %vm266, %v211, 0
        %v298 = vsel %vm266, %v212, 0
        %v301 = vsel %vm266, %v213, 0
        %v304 = vsel %vm266, %v214, 0
        %v307 = vsel %vm266, %v215, 0
        %v310 = vsel %vm266, %v216, 0
        %v313 = vsel %vm266, %v217, 0
        %315 = vmatpush.bf16.msra.mxu0 0
        %316 = vmatpush.bf16.msra.mxu0 0
        %317 = vmatpush.bf16.msra.mxu0 0
        %318 = vmatpush.bf16.msra.mxu0 0
        %319 = vmatpush.bf16.msra.mxu0 0
        %320 = vmatpush.bf16.msra.mxu0 0
        %321 = vmatpush.bf16.msra.mxu0 %v254
        %322 = vmatpush.bf16.msra.mxu0 %v250
        %323 = vmatmul.bf16.gmra.mxu0 %v268
        %v324 = vpop.f32.mrf.mxu0
        %v325 = vadd.f32 0.0, %v324
        %v326 = vpop.f32.mrf.mxu0
        %v327 = vadd.f32 0.0, %v326
        %328 = vmatmul.bf16.gmra.mxu0 %v271
        %v329 = vpop.f32.mrf.mxu0
        %v330 = vadd.f32 0.0, %v329
        %v331 = vpop.f32.mrf.mxu0
        %v332 = vadd.f32 0.0, %v331
        %333 = vmatmul.bf16.gmra.mxu0 %v274
        %v334 = vpop.f32.mrf.mxu0
        %v335 = vadd.f32 0.0, %v334
        %v336 = vpop.f32.mrf.mxu0
        %v337 = vadd.f32 0.0, %v336
        %338 = vmatmul.bf16.gmra.mxu0 %v277
        %v339 = vpop.f32.mrf.mxu0
        %v340 = vadd.f32 0.0, %v339
        %v341 = vpop.f32.mrf.mxu0
        %v342 = vadd.f32 0.0, %v341
        %343 = vmatmul.bf16.gmra.mxu0 %v280
        %v344 = vpop.f32.mrf.mxu0
        %v345 = vadd.f32 0.0, %v344
        %v346 = vpop.f32.mrf.mxu0
        %v347 = vadd.f32 0.0, %v346
        %348 = vmatmul.bf16.gmra.mxu0 %v283
        %v349 = vpop.f32.mrf.mxu0
        %v350 = vadd.f32 0.0, %v349
        %v351 = vpop.f32.mrf.mxu0
        %v352 = vadd.f32 0.0, %v351
        %353 = vmatmul.bf16.gmra.mxu0 %v286
        %v354 = vpop.f32.mrf.mxu0
        %v355 = vadd.f32 0.0, %v354
        %v356 = vpop.f32.mrf.mxu0
        %v357 = vadd.f32 0.0, %v356
        %358 = vmatmul.bf16.gmra.mxu0 %v289
        %v359 = vpop.f32.mrf.mxu0
        %v360 = vadd.f32 0.0, %v359
        %v361 = vpop.f32.mrf.mxu0
        %v362 = vadd.f32 0.0, %v361
        %363 = vmatmul.bf16.gmra.mxu0 %v292
        %v364 = vpop.f32.mrf.mxu0
        %v365 = vadd.f32 0.0, %v364
        %v366 = vpop.f32.mrf.mxu0
        %v367 = vadd.f32 0.0, %v366
        %368 = vmatmul.bf16.gmra.mxu0 %v295
        %v369 = vpop.f32.mrf.mxu0
        %v370 = vadd.f32 0.0, %v369
        %v371 = vpop.f32.mrf.mxu0
        %v372 = vadd.f32 0.0, %v371
        %373 = vmatmul.bf16.gmra.mxu0 %v298
        %v374 = vpop.f32.mrf.mxu0
        %v375 = vadd.f32 0.0, %v374
        %v376 = vpop.f32.mrf.mxu0
        %v377 = vadd.f32 0.0, %v376
        %378 = vmatmul.bf16.gmra.mxu0 %v301
        %v379 = vpop.f32.mrf.mxu0
        %v380 = vadd.f32 0.0, %v379
        %v381 = vpop.f32.mrf.mxu0
        %v382 = vadd.f32 0.0, %v381
        %383 = vmatmul.bf16.gmra.mxu0 %v304
        %v384 = vpop.f32.mrf.mxu0
        %v385 = vadd.f32 0.0, %v384
        %v386 = vpop.f32.mrf.mxu0
        %v387 = vadd.f32 0.0, %v386
        %388 = vmatmul.bf16.gmra.mxu0 %v307
        %v389 = vpop.f32.mrf.mxu0
        %v390 = vadd.f32 0.0, %v389
        %v391 = vpop.f32.mrf.mxu0
        %v392 = vadd.f32 0.0, %v391
        %393 = vmatmul.bf16.gmra.mxu0 %v310
        %v394 = vpop.f32.mrf.mxu0
        %v395 = vadd.f32 0.0, %v394
        %v396 = vpop.f32.mrf.mxu0
        %v397 = vadd.f32 0.0, %v396
        %398 = vmatmul.bf16.gmra.mxu0 %v313
        %v399 = vpop.f32.mrf.mxu0
        %v400 = vadd.f32 0.0, %v399
        %v401 = vpop.f32.mrf.mxu0
        %v402 = vadd.f32 0.0, %v401
        %403 = vdwg.mxu0
        %404 = vmatpush.bf16.msra.mxu0 0
        %405 = vmatpush.bf16.msra.mxu0 0
        %406 = vmatpush.bf16.msra.mxu0 0
        %407 = vmatpush.bf16.msra.mxu0 0
        %408 = vmatpush.bf16.msra.mxu0 0
        %409 = vmatpush.bf16.msra.mxu0 0
        %410 = vmatpush.bf16.msra.mxu0 %v255
        %411 = vmatpush.bf16.msra.mxu0 %v251
        %412 = vmatmul.bf16.gmra.mxu0 %v268
        %v413 = vpop.f32.mrf.mxu0
        %v414 = vadd.f32 0.0, %v413
        %v415 = vpop.f32.mrf.mxu0
        %v416 = vadd.f32 0.0, %v415
        %417 = vmatmul.bf16.gmra.mxu0 %v271
        %v418 = vpop.f32.mrf.mxu0
        %v419 = vadd.f32 0.0, %v418
        %v420 = vpop.f32.mrf.mxu0
        %v421 = vadd.f32 0.0, %v420
        %422 = vmatmul.bf16.gmra.mxu0 %v274
        %v423 = vpop.f32.mrf.mxu0
        %v424 = vadd.f32 0.0, %v423
        %v425 = vpop.f32.mrf.mxu0
        %v426 = vadd.f32 0.0, %v425
        %427 = vmatmul.bf16.gmra.mxu0 %v277
        %v428 = vpop.f32.mrf.mxu0
        %v429 = vadd.f32 0.0, %v428
        %v430 = vpop.f32.mrf.mxu0
        %v431 = vadd.f32 0.0, %v430
        %432 = vmatmul.bf16.gmra.mxu0 %v280
        %v433 = vpop.f32.mrf.mxu0
        %v434 = vadd.f32 0.0, %v433
        %v435 = vpop.f32.mrf.mxu0
        %v436 = vadd.f32 0.0, %v435
        %437 = vmatmul.bf16.gmra.mxu0 %v283
        %v438 = vpop.f32.mrf.mxu0
        %v439 = vadd.f32 0.0, %v438
        %v440 = vpop.f32.mrf.mxu0
        %v441 = vadd.f32 0.0, %v440
        %442 = vmatmul.bf16.gmra.mxu0 %v286
        %v443 = vpop.f32.mrf.mxu0
        %v444 = vadd.f32 0.0, %v443
        %v445 = vpop.f32.mrf.mxu0
        %v446 = vadd.f32 0.0, %v445
        %447 = vmatmul.bf16.gmra.mxu0 %v289
        %v448 = vpop.f32.mrf.mxu0
        %v449 = vadd.f32 0.0, %v448
        %v450 = vpop.f32.mrf.mxu0
        %v451 = vadd.f32 0.0, %v450
        %452 = vmatmul.bf16.gmra.mxu0 %v292
        %v453 = vpop.f32.mrf.mxu0
        %v454 = vadd.f32 0.0, %v453
        %v455 = vpop.f32.mrf.mxu0
        %v456 = vadd.f32 0.0, %v455
        %457 = vmatmul.bf16.gmra.mxu0 %v295
        %v458 = vpop.f32.mrf.mxu0
        %v459 = vadd.f32 0.0, %v458
        %v460 = vpop.f32.mrf.mxu0
        %v461 = vadd.f32 0.0, %v460
        %462 = vmatmul.bf16.gmra.mxu0 %v298
        %v463 = vpop.f32.mrf.mxu0
        %v464 = vadd.f32 0.0, %v463
        %v465 = vpop.f32.mrf.mxu0
        %v466 = vadd.f32 0.0, %v465
        %467 = vmatmul.bf16.gmra.mxu0 %v301
        %v468 = vpop.f32.mrf.mxu0
        %v469 = vadd.f32 0.0, %v468
        %v470 = vpop.f32.mrf.mxu0
        %v471 = vadd.f32 0.0, %v470
        %472 = vmatmul.bf16.gmra.mxu0 %v304
        %v473 = vpop.f32.mrf.mxu0
        %v474 = vadd.f32 0.0, %v473
        %v475 = vpop.f32.mrf.mxu0
        %v476 = vadd.f32 0.0, %v475
        %477 = vmatmul.bf16.gmra.mxu0 %v307
        %v478 = vpop.f32.mrf.mxu0
        %v479 = vadd.f32 0.0, %v478
        %v480 = vpop.f32.mrf.mxu0
        %v481 = vadd.f32 0.0, %v480
        %482 = vmatmul.bf16.gmra.mxu0 %v310
        %v483 = vpop.f32.mrf.mxu0
        %v484 = vadd.f32 0.0, %v483
        %v485 = vpop.f32.mrf.mxu0
        %v486 = vadd.f32 0.0, %v485
        %487 = vmatmul.bf16.gmra.mxu0 %v313
        %v488 = vpop.f32.mrf.mxu0
        %v489 = vadd.f32 0.0, %v488
        %v490 = vpop.f32.mrf.mxu0
        %v491 = vadd.f32 0.0, %v490
        %492 = vdwg.mxu0
        %493 = vmatpush.bf16.msra.mxu0 0
        %494 = vmatpush.bf16.msra.mxu0 0
        %495 = vmatpush.bf16.msra.mxu0 0
        %496 = vmatpush.bf16.msra.mxu0 0
        %497 = vmatpush.bf16.msra.mxu0 0
        %498 = vmatpush.bf16.msra.mxu0 0
        %499 = vmatpush.bf16.msra.mxu0 %v256
        %500 = vmatpush.bf16.msra.mxu0 %v252
        %501 = vmatmul.bf16.gmra.mxu0 %v268
        %v502 = vpop.f32.mrf.mxu0
        %v503 = vadd.f32 0.0, %v502
        %v504 = vpop.f32.mrf.mxu0
        %v505 = vadd.f32 0.0, %v504
        %506 = vmatmul.bf16.gmra.mxu0 %v271
        %v507 = vpop.f32.mrf.mxu0
        %v508 = vadd.f32 0.0, %v507
        %v509 = vpop.f32.mrf.mxu0
        %v510 = vadd.f32 0.0, %v509
        %511 = vmatmul.bf16.gmra.mxu0 %v274
        %v512 = vpop.f32.mrf.mxu0
        %v513 = vadd.f32 0.0, %v512
        %v514 = vpop.f32.mrf.mxu0
        %v515 = vadd.f32 0.0, %v514
        %516 = vmatmul.bf16.gmra.mxu0 %v277
        %v517 = vpop.f32.mrf.mxu0
        %v518 = vadd.f32 0.0, %v517
        %v519 = vpop.f32.mrf.mxu0
        %v520 = vadd.f32 0.0, %v519
        %521 = vmatmul.bf16.gmra.mxu0 %v280
        %v522 = vpop.f32.mrf.mxu0
        %v523 = vadd.f32 0.0, %v522
        %v524 = vpop.f32.mrf.mxu0
        %v525 = vadd.f32 0.0, %v524
        %526 = vmatmul.bf16.gmra.mxu0 %v283
        %v527 = vpop.f32.mrf.mxu0
        %v528 = vadd.f32 0.0, %v527
        %v529 = vpop.f32.mrf.mxu0
        %v530 = vadd.f32 0.0, %v529
        %531 = vmatmul.bf16.gmra.mxu0 %v286
        %v532 = vpop.f32.mrf.mxu0
        %v533 = vadd.f32 0.0, %v532
        %v534 = vpop.f32.mrf.mxu0
        %v535 = vadd.f32 0.0, %v534
        %536 = vmatmul.bf16.gmra.mxu0 %v289
        %v537 = vpop.f32.mrf.mxu0
        %v538 = vadd.f32 0.0, %v537
        %v539 = vpop.f32.mrf.mxu0
        %v540 = vadd.f32 0.0, %v539
        %541 = vmatmul.bf16.gmra.mxu0 %v292
        %v542 = vpop.f32.mrf.mxu0
        %v543 = vadd.f32 0.0, %v542
        %v544 = vpop.f32.mrf.mxu0
        %v545 = vadd.f32 0.0, %v544
        %546 = vmatmul.bf16.gmra.mxu0 %v295
        %v547 = vpop.f32.mrf.mxu0
        %v548 = vadd.f32 0.0, %v547
        %v549 = vpop.f32.mrf.mxu0
        %v550 = vadd.f32 0.0, %v549
        %551 = vmatmul.bf16.gmra.mxu0 %v298
        %v552 = vpop.f32.mrf.mxu0
        %v553 = vadd.f32 0.0, %v552
        %v554 = vpop.f32.mrf.mxu0
        %v555 = vadd.f32 0.0, %v554
        %556 = vmatmul.bf16.gmra.mxu0 %v301
        %v557 = vpop.f32.mrf.mxu0
        %v558 = vadd.f32 0.0, %v557
        %v559 = vpop.f32.mrf.mxu0
        %v560 = vadd.f32 0.0, %v559
        %561 = vmatmul.bf16.gmra.mxu0 %v304
        %v562 = vpop.f32.mrf.mxu0
        %v563 = vadd.f32 0.0, %v562
        %v564 = vpop.f32.mrf.mxu0
        %v565 = vadd.f32 0.0, %v564
        %566 = vmatmul.bf16.gmra.mxu0 %v307
        %v567 = vpop.f32.mrf.mxu0
        %v568 = vadd.f32 0.0, %v567
        %v569 = vpop.f32.mrf.mxu0
        %v570 = vadd.f32 0.0, %v569
        %571 = vmatmul.bf16.gmra.mxu0 %v310
        %v572 = vpop.f32.mrf.mxu0
        %v573 = vadd.f32 0.0, %v572
        %v574 = vpop.f32.mrf.mxu0
        %v575 = vadd.f32 0.0, %v574
        %576 = vmatmul.bf16.gmra.mxu0 %v313
        %v577 = vpop.f32.mrf.mxu0
        %v578 = vadd.f32 0.0, %v577
        %v579 = vpop.f32.mrf.mxu0
        %v580 = vadd.f32 0.0, %v579
        %581 = vdwg.mxu0
        %582 = vmatpush.bf16.msra.mxu0 0
        %583 = vmatpush.bf16.msra.mxu0 0
        %584 = vmatpush.bf16.msra.mxu0 0
        %585 = vmatpush.bf16.msra.mxu0 0
        %586 = vmatpush.bf16.msra.mxu0 0
        %587 = vmatpush.bf16.msra.mxu0 0
        %588 = vmatpush.bf16.msra.mxu0 %v257
        %589 = vmatpush.bf16.msra.mxu0 %v253
        %590 = vmatmul.bf16.gmra.mxu0 %v268
        %v591 = vpop.f32.mrf.mxu0
        %v592 = vadd.f32 0.0, %v591
        %v593 = vpop.f32.mrf.mxu0
        %v594 = vadd.f32 0.0, %v593
        %595 = vmatmul.bf16.gmra.mxu0 %v271
        %v596 = vpop.f32.mrf.mxu0
        %v597 = vadd.f32 0.0, %v596
        %v598 = vpop.f32.mrf.mxu0
        %v599 = vadd.f32 0.0, %v598
        %600 = vmatmul.bf16.gmra.mxu0 %v274
        %v601 = vpop.f32.mrf.mxu0
        %v602 = vadd.f32 0.0, %v601
        %v603 = vpop.f32.mrf.mxu0
        %v604 = vadd.f32 0.0, %v603
        %605 = vmatmul.bf16.gmra.mxu0 %v277
        %v606 = vpop.f32.mrf.mxu0
        %v607 = vadd.f32 0.0, %v606
        %v608 = vpop.f32.mrf.mxu0
        %v609 = vadd.f32 0.0, %v608
        %610 = vmatmul.bf16.gmra.mxu0 %v280
        %v611 = vpop.f32.mrf.mxu0
        %v612 = vadd.f32 0.0, %v611
        %v613 = vpop.f32.mrf.mxu0
        %v614 = vadd.f32 0.0, %v613
        %615 = vmatmul.bf16.gmra.mxu0 %v283
        %v616 = vpop.f32.mrf.mxu0
        %v617 = vadd.f32 0.0, %v616
        %v618 = vpop.f32.mrf.mxu0
        %v619 = vadd.f32 0.0, %v618
        %620 = vmatmul.bf16.gmra.mxu0 %v286
        %v621 = vpop.f32.mrf.mxu0
        %v622 = vadd.f32 0.0, %v621
        %v623 = vpop.f32.mrf.mxu0
        %v624 = vadd.f32 0.0, %v623
        %625 = vmatmul.bf16.gmra.mxu0 %v289
        %v626 = vpop.f32.mrf.mxu0
        %v627 = vadd.f32 0.0, %v626
        %v628 = vpop.f32.mrf.mxu0
        %v629 = vadd.f32 0.0, %v628
        %630 = vmatmul.bf16.gmra.mxu0 %v292
        %v631 = vpop.f32.mrf.mxu0
        %v632 = vadd.f32 0.0, %v631
        %v633 = vpop.f32.mrf.mxu0
        %v634 = vadd.f32 0.0, %v633
        %635 = vmatmul.bf16.gmra.mxu0 %v295
        %v636 = vpop.f32.mrf.mxu0
        %v637 = vadd.f32 0.0, %v636
        %v638 = vpop.f32.mrf.mxu0
        %v639 = vadd.f32 0.0, %v638
        %640 = vmatmul.bf16.gmra.mxu0 %v298
        %v641 = vpop.f32.mrf.mxu0
        %v642 = vadd.f32 0.0, %v641
        %v643 = vpop.f32.mrf.mxu0
        %v644 = vadd.f32 0.0, %v643
        %645 = vmatmul.bf16.gmra.mxu0 %v301
        %v646 = vpop.f32.mrf.mxu0
        %v647 = vadd.f32 0.0, %v646
        %v648 = vpop.f32.mrf.mxu0
        %v649 = vadd.f32 0.0, %v648
        %650 = vmatmul.bf16.gmra.mxu0 %v304
        %v651 = vpop.f32.mrf.mxu0
        %v652 = vadd.f32 0.0, %v651
        %v653 = vpop.f32.mrf.mxu0
        %v654 = vadd.f32 0.0, %v653
        %655 = vmatmul.bf16.gmra.mxu0 %v307
        %v656 = vpop.f32.mrf.mxu0
        %v657 = vadd.f32 0.0, %v656
        %v658 = vpop.f32.mrf.mxu0
        %v659 = vadd.f32 0.0, %v658
        %660 = vmatmul.bf16.gmra.mxu0 %v310
        %v661 = vpop.f32.mrf.mxu0
        %v662 = vadd.f32 0.0, %v661
        %v663 = vpop.f32.mrf.mxu0
        %v664 = vadd.f32 0.0, %v663
        %665 = vmatmul.bf16.gmra.mxu0 %v313
        %v666 = vpop.f32.mrf.mxu0
        %v667 = vadd.f32 0.0, %v666
        %v668 = vpop.f32.mrf.mxu0
        %v669 = vadd.f32 0.0, %v668
        %670 = vdwg.mxu0
        %vm671 = vcmask 23552
        %v672 = vsel %vm671, %v592, -inf
        %673 = vmax.xlane.f32.xlu0 %v672
        %v674 = vpop.xlane.xlu0 %673
        %v675 = vsel %vm671, %v594, -inf
        %676 = vmax.xlane.f32.xlu0 %v675
        %v677 = vpop.xlane.xlu0 %676
        %v678 = vsel %vm671, %v597, -inf
        %679 = vmax.xlane.f32.xlu0 %v678
        %v680 = vpop.xlane.xlu0 %679
        %v681 = vsel %vm671, %v599, -inf
        %682 = vmax.xlane.f32.xlu0 %v681
        %v683 = vpop.xlane.xlu0 %682
        %v684 = vsel %vm671, %v602, -inf
        %685 = vmax.xlane.f32.xlu0 %v684
        %v686 = vpop.xlane.xlu0 %685
        %v687 = vsel %vm671, %v604, -inf
        %688 = vmax.xlane.f32.xlu0 %v687
        %v689 = vpop.xlane.xlu0 %688
        %v690 = vsel %vm671, %v607, -inf
        %691 = vmax.xlane.f32.xlu0 %v690
        %v692 = vpop.xlane.xlu0 %691
        %v693 = vsel %vm671, %v609, -inf
        %694 = vmax.xlane.f32.xlu0 %v693
        %v695 = vpop.xlane.xlu0 %694
        %v696 = vsel %vm671, %v612, -inf
        %697 = vmax.xlane.f32.xlu0 %v696
        %v698 = vpop.xlane.xlu0 %697
        %v699 = vsel %vm671, %v614, -inf
        %700 = vmax.xlane.f32.xlu0 %v699
        %v701 = vpop.xlane.xlu0 %700
        %v702 = vsel %vm671, %v617, -inf
        %703 = vmax.xlane.f32.xlu0 %v702
        %v704 = vpop.xlane.xlu0 %703
        %v705 = vsel %vm671, %v619, -inf
        %706 = vmax.xlane.f32.xlu0 %v705
        %v707 = vpop.xlane.xlu0 %706
        %v708 = vsel %vm671, %v622, -inf
        %709 = vmax.xlane.f32.xlu0 %v708
        %v710 = vpop.xlane.xlu0 %709
        %v711 = vsel %vm671, %v624, -inf
        %712 = vmax.xlane.f32.xlu0 %v711
        %v713 = vpop.xlane.xlu0 %712
        %v714 = vsel %vm671, %v627, -inf
        %715 = vmax.xlane.f32.xlu0 %v714
        %v716 = vpop.xlane.xlu0 %715
        %v717 = vsel %vm671, %v629, -inf
        %718 = vmax.xlane.f32.xlu0 %v717
        %v719 = vpop.xlane.xlu0 %718
        %v720 = vsel %vm671, %v632, -inf
        %721 = vmax.xlane.f32.xlu0 %v720
        %v722 = vpop.xlane.xlu0 %721
        %v723 = vsel %vm671, %v634, -inf
        %724 = vmax.xlane.f32.xlu0 %v723
        %v725 = vpop.xlane.xlu0 %724
        %v726 = vsel %vm671, %v637, -inf
        %727 = vmax.xlane.f32.xlu0 %v726
        %v728 = vpop.xlane.xlu0 %727
        %v729 = vsel %vm671, %v639, -inf
        %730 = vmax.xlane.f32.xlu0 %v729
        %v731 = vpop.xlane.xlu0 %730
        %v732 = vsel %vm671, %v642, -inf
        %733 = vmax.xlane.f32.xlu0 %v732
        %v734 = vpop.xlane.xlu0 %733
        %v735 = vsel %vm671, %v644, -inf
        %736 = vmax.xlane.f32.xlu0 %v735
        %v737 = vpop.xlane.xlu0 %736
        %v738 = vsel %vm671, %v647, -inf
        %739 = vmax.xlane.f32.xlu0 %v738
        %v740 = vpop.xlane.xlu0 %739
        %v741 = vsel %vm671, %v649, -inf
        %742 = vmax.xlane.f32.xlu0 %v741
        %v743 = vpop.xlane.xlu0 %742
        %v744 = vsel %vm671, %v652, -inf
        %745 = vmax.xlane.f32.xlu0 %v744
        %v746 = vpop.xlane.xlu0 %745
        %v747 = vsel %vm671, %v654, -inf
        %748 = vmax.xlane.f32.xlu0 %v747
        %v749 = vpop.xlane.xlu0 %748
        %v750 = vsel %vm671, %v657, -inf
        %751 = vmax.xlane.f32.xlu0 %v750
        %v752 = vpop.xlane.xlu0 %751
        %v753 = vsel %vm671, %v659, -inf
        %754 = vmax.xlane.f32.xlu0 %v753
        %v755 = vpop.xlane.xlu0 %754
        %v756 = vsel %vm671, %v662, -inf
        %757 = vmax.xlane.f32.xlu0 %v756
        %v758 = vpop.xlane.xlu0 %757
        %v759 = vsel %vm671, %v664, -inf
        %760 = vmax.xlane.f32.xlu0 %v759
        %v761 = vpop.xlane.xlu0 %760
        %v762 = vsel %vm671, %v667, -inf
        %763 = vmax.xlane.f32.xlu0 %v762
        %v764 = vpop.xlane.xlu0 %763
        %v765 = vsel %vm671, %v669, -inf
        %766 = vmax.xlane.f32.xlu0 %v765
        %v767 = vpop.xlane.xlu0 %766
        %v768 = vsub.f32 %v592, %v674
        %v769 = vsub.f32 %v594, %v677
        %v770 = vsub.f32 %v597, %v680
        %v771 = vsub.f32 %v599, %v683
        %v772 = vsub.f32 %v602, %v686
        %v773 = vsub.f32 %v604, %v689
        %v774 = vsub.f32 %v607, %v692
        %v775 = vsub.f32 %v609, %v695
        %v776 = vsub.f32 %v612, %v698
        %v777 = vsub.f32 %v614, %v701
        %v778 = vsub.f32 %v617, %v704
        %v779 = vsub.f32 %v619, %v707
        %v780 = vsub.f32 %v622, %v710
        %v781 = vsub.f32 %v624, %v713
        %v782 = vsub.f32 %v627, %v716
        %v783 = vsub.f32 %v629, %v719
        %v784 = vsub.f32 %v632, %v722
        %v785 = vsub.f32 %v634, %v725
        %v786 = vsub.f32 %v637, %v728
        %v787 = vsub.f32 %v639, %v731
        %v788 = vsub.f32 %v642, %v734
        %v789 = vsub.f32 %v644, %v737
        %v790 = vsub.f32 %v647, %v740
        %v791 = vsub.f32 %v649, %v743
        %v792 = vsub.f32 %v652, %v746
        %v793 = vsub.f32 %v654, %v749
        %v794 = vsub.f32 %v657, %v752
        %v795 = vsub.f32 %v659, %v755
        %v796 = vsub.f32 %v662, %v758
        %v797 = vsub.f32 %v664, %v761
        %v798 = vsub.f32 %v667, %v764
        %v799 = vsub.f32 %v669, %v767
        %v800 = vmul.f32 %v768, 1.442695
        %v801 = vpow.pop %v800
        %v802 = vmul.f32 %v769, 1.442695
        %v803 = vpow.pop %v802
        %v804 = vmul.f32 %v770, 1.442695
        %v805 = vpow.pop %v804
        %v806 = vmul.f32 %v771, 1.442695
        %v807 = vpow.pop %v806
        %v808 = vmul.f32 %v772, 1.442695
        %v809 = vpow.pop %v808
        %v810 = vmul.f32 %v773, 1.442695
        %v811 = vpow.pop %v810
        %v812 = vmul.f32 %v774, 1.442695
        %v813 = vpow.pop %v812
        %v814 = vmul.f32 %v775, 1.442695
        %v815 = vpow.pop %v814
        %v816 = vmul.f32 %v776, 1.442695
        %v817 = vpow.pop %v816
        %v818 = vmul.f32 %v777, 1.442695
        %v819 = vpow.pop %v818
        %v820 = vmul.f32 %v778, 1.442695
        %v821 = vpow.pop %v820
        %v822 = vmul.f32 %v779, 1.442695
        %v823 = vpow.pop %v822
        %v824 = vmul.f32 %v780, 1.442695
        %v825 = vpow.pop %v824
        %v826 = vmul.f32 %v781, 1.442695
        %v827 = vpow.pop %v826
        %v828 = vmul.f32 %v782, 1.442695
        %v829 = vpow.pop %v828
        %v830 = vmul.f32 %v783, 1.442695
        %v831 = vpow.pop %v830
        %v832 = vmul.f32 %v784, 1.442695
        %v833 = vpow.pop %v832
        %v834 = vmul.f32 %v785, 1.442695
        %v835 = vpow.pop %v834
        %v836 = vmul.f32 %v786, 1.442695
        %v837 = vpow.pop %v836
        %v838 = vmul.f32 %v787, 1.442695
        %v839 = vpow.pop %v838
        %v840 = vmul.f32 %v788, 1.442695
        %v841 = vpow.pop %v840
        %v842 = vmul.f32 %v789, 1.442695
        %v843 = vpow.pop %v842
        %v844 = vmul.f32 %v790, 1.442695
        %v845 = vpow.pop %v844
        %v846 = vmul.f32 %v791, 1.442695
        %v847 = vpow.pop %v846
        %v848 = vmul.f32 %v792, 1.442695
        %v849 = vpow.pop %v848
        %v850 = vmul.f32 %v793, 1.442695
        %v851 = vpow.pop %v850
        %v852 = vmul.f32 %v794, 1.442695
        %v853 = vpow.pop %v852
        %v854 = vmul.f32 %v795, 1.442695
        %v855 = vpow.pop %v854
        %v856 = vmul.f32 %v796, 1.442695
        %v857 = vpow.pop %v856
        %v858 = vmul.f32 %v797, 1.442695
        %v859 = vpow.pop %v858
        %v860 = vmul.f32 %v798, 1.442695
        %v861 = vpow.pop %v860
        %v862 = vmul.f32 %v799, 1.442695
        %v863 = vpow.pop %v862
        %v864 = vsel %vm671, %v801, 0.0
        %865 = vadd.xlane.f32.xlu0 %v864
        %v866 = vpop.xlane.xlu0 %865
        %v867 = vsel %vm671, %v803, 0.0
        %868 = vadd.xlane.f32.xlu0 %v867
        %v869 = vpop.xlane.xlu0 %868
        %v870 = vsel %vm671, %v805, 0.0
        %871 = vadd.xlane.f32.xlu0 %v870
        %v872 = vpop.xlane.xlu0 %871
        %v873 = vsel %vm671, %v807, 0.0
        %874 = vadd.xlane.f32.xlu0 %v873
        %v875 = vpop.xlane.xlu0 %874
        %v876 = vsel %vm671, %v809, 0.0
        %877 = vadd.xlane.f32.xlu0 %v876
        %v878 = vpop.xlane.xlu0 %877
        %v879 = vsel %vm671, %v811, 0.0
        %880 = vadd.xlane.f32.xlu0 %v879
        %v881 = vpop.xlane.xlu0 %880
        %v882 = vsel %vm671, %v813, 0.0
        %883 = vadd.xlane.f32.xlu0 %v882
        %v884 = vpop.xlane.xlu0 %883
        %v885 = vsel %vm671, %v815, 0.0
        %886 = vadd.xlane.f32.xlu0 %v885
        %v887 = vpop.xlane.xlu0 %886
        %v888 = vsel %vm671, %v817, 0.0
        %889 = vadd.xlane.f32.xlu0 %v888
        %v890 = vpop.xlane.xlu0 %889
        %v891 = vsel %vm671, %v819, 0.0
        %892 = vadd.xlane.f32.xlu0 %v891
        %v893 = vpop.xlane.xlu0 %892
        %v894 = vsel %vm671, %v821, 0.0
        %895 = vadd.xlane.f32.xlu0 %v894
        %v896 = vpop.xlane.xlu0 %895
        %v897 = vsel %vm671, %v823, 0.0
        %898 = vadd.xlane.f32.xlu0 %v897
        %v899 = vpop.xlane.xlu0 %898
        %v900 = vsel %vm671, %v825, 0.0
        %901 = vadd.xlane.f32.xlu0 %v900
        %v902 = vpop.xlane.xlu0 %901
        %v903 = vsel %vm671, %v827, 0.0
        %904 = vadd.xlane.f32.xlu0 %v903
        %v905 = vpop.xlane.xlu0 %904
        %v906 = vsel %vm671, %v829, 0.0
        %907 = vadd.xlane.f32.xlu0 %v906
        %v908 = vpop.xlane.xlu0 %907
        %v909 = vsel %vm671, %v831, 0.0
        %910 = vadd.xlane.f32.xlu0 %v909
        %v911 = vpop.xlane.xlu0 %910
        %v912 = vsel %vm671, %v833, 0.0
        %913 = vadd.xlane.f32.xlu0 %v912
        %v914 = vpop.xlane.xlu0 %913
        %v915 = vsel %vm671, %v835, 0.0
        %916 = vadd.xlane.f32.xlu0 %v915
        %v917 = vpop.xlane.xlu0 %916
        %v918 = vsel %vm671, %v837, 0.0
        %919 = vadd.xlane.f32.xlu0 %v918
        %v920 = vpop.xlane.xlu0 %919
        %v921 = vsel %vm671, %v839, 0.0
        %922 = vadd.xlane.f32.xlu0 %v921
        %v923 = vpop.xlane.xlu0 %922
        %v924 = vsel %vm671, %v841, 0.0
        %925 = vadd.xlane.f32.xlu0 %v924
        %v926 = vpop.xlane.xlu0 %925
        %v927 = vsel %vm671, %v843, 0.0
        %928 = vadd.xlane.f32.xlu0 %v927
        %v929 = vpop.xlane.xlu0 %928
        %v930 = vsel %vm671, %v845, 0.0
        %931 = vadd.xlane.f32.xlu0 %v930
        %v932 = vpop.xlane.xlu0 %931
        %v933 = vsel %vm671, %v847, 0.0
        %934 = vadd.xlane.f32.xlu0 %v933
        %v935 = vpop.xlane.xlu0 %934
        %v936 = vsel %vm671, %v849, 0.0
        %937 = vadd.xlane.f32.xlu0 %v936
        %v938 = vpop.xlane.xlu0 %937
        %v939 = vsel %vm671, %v851, 0.0
        %940 = vadd.xlane.f32.xlu0 %v939
        %v941 = vpop.xlane.xlu0 %940
        %v942 = vsel %vm671, %v853, 0.0
        %943 = vadd.xlane.f32.xlu0 %v942
        %v944 = vpop.xlane.xlu0 %943
        %v945 = vsel %vm671, %v855, 0.0
        %946 = vadd.xlane.f32.xlu0 %v945
        %v947 = vpop.xlane.xlu0 %946
        %v948 = vsel %vm671, %v857, 0.0
        %949 = vadd.xlane.f32.xlu0 %v948
        %v950 = vpop.xlane.xlu0 %949
        %v951 = vsel %vm671, %v859, 0.0
        %952 = vadd.xlane.f32.xlu0 %v951
        %v953 = vpop.xlane.xlu0 %952
        %v954 = vsel %vm671, %v861, 0.0
        %955 = vadd.xlane.f32.xlu0 %v954
        %v956 = vpop.xlane.xlu0 %955
        %v957 = vsel %vm671, %v863, 0.0
        %958 = vadd.xlane.f32.xlu0 %v957
        %v959 = vpop.xlane.xlu0 %958
        %v960 = vrcp.pop %v866
        %v961 = vrcp.pop %v869
        %v962 = vrcp.pop %v872
        %v963 = vrcp.pop %v875
        %v964 = vrcp.pop %v878
        %v965 = vrcp.pop %v881
        %v966 = vrcp.pop %v884
        %v967 = vrcp.pop %v887
        %v968 = vrcp.pop %v890
        %v969 = vrcp.pop %v893
        %v970 = vrcp.pop %v896
        %v971 = vrcp.pop %v899
        %v972 = vrcp.pop %v902
        %v973 = vrcp.pop %v905
        %v974 = vrcp.pop %v908
        %v975 = vrcp.pop %v911
        %v976 = vrcp.pop %v914
        %v977 = vrcp.pop %v917
        %v978 = vrcp.pop %v920
        %v979 = vrcp.pop %v923
        %v980 = vrcp.pop %v926
        %v981 = vrcp.pop %v929
        %v982 = vrcp.pop %v932
        %v983 = vrcp.pop %v935
        %v984 = vrcp.pop %v938
        %v985 = vrcp.pop %v941
        %v986 = vrcp.pop %v944
        %v987 = vrcp.pop %v947
        %v988 = vrcp.pop %v950
        %v989 = vrcp.pop %v953
        %v990 = vrcp.pop %v956
        %v991 = vrcp.pop %v959
        %v992 = vmul.f32 %v801, %v960
        %v993 = vmul.f32 %v803, %v961
        %v994 = vmul.f32 %v805, %v962
        %v995 = vmul.f32 %v807, %v963
        %v996 = vmul.f32 %v809, %v964
        %v997 = vmul.f32 %v811, %v965
        %v998 = vmul.f32 %v813, %v966
        %v999 = vmul.f32 %v815, %v967
        %v1000 = vmul.f32 %v817, %v968
        %v1001 = vmul.f32 %v819, %v969
        %v1002 = vmul.f32 %v821, %v970
        %v1003 = vmul.f32 %v823, %v971
        %v1004 = vmul.f32 %v825, %v972
        %v1005 = vmul.f32 %v827, %v973
        %v1006 = vmul.f32 %v829, %v974
        %v1007 = vmul.f32 %v831, %v975
        %v1008 = vmul.f32 %v833, %v976
        %v1009 = vmul.f32 %v835, %v977
        %v1010 = vmul.f32 %v837, %v978
        %v1011 = vmul.f32 %v839, %v979
        %v1012 = vmul.f32 %v841, %v980
        %v1013 = vmul.f32 %v843, %v981
        %v1014 = vmul.f32 %v845, %v982
        %v1015 = vmul.f32 %v847, %v983
        %v1016 = vmul.f32 %v849, %v984
        %v1017 = vmul.f32 %v851, %v985
        %v1018 = vmul.f32 %v853, %v986
        %v1019 = vmul.f32 %v855, %v987
        %v1020 = vmul.f32 %v857, %v988
        %v1021 = vmul.f32 %v859, %v989
        %v1022 = vmul.f32 %v861, %v990
        %v1023 = vmul.f32 %v863, %v991
        %1025 = vset.pattern.permute.xlu0 0
        %1026 = vperm.xlu0 %1025, %v992
        %v1027 = vpop.permute.xlu0 %1026
        %1030 = vset.pattern.permute.xlu0 0
        %1031 = vperm.xlu0 %1030, %v993
        %v1032 = vpop.permute.xlu0 %1031
        %1035 = vset.pattern.permute.xlu0 0
        %1036 = vperm.xlu0 %1035, %v994
        %v1037 = vpop.permute.xlu0 %1036
        %1040 = vset.pattern.permute.xlu0 0
        %1041 = vperm.xlu0 %1040, %v995
        %v1042 = vpop.permute.xlu0 %1041
        %1045 = vset.pattern.permute.xlu0 0
        %1046 = vperm.xlu0 %1045, %v996
        %v1047 = vpop.permute.xlu0 %1046
        %1050 = vset.pattern.permute.xlu0 0
        %1051 = vperm.xlu0 %1050, %v997
        %v1052 = vpop.permute.xlu0 %1051
        %1055 = vset.pattern.permute.xlu0 0
        %1056 = vperm.xlu0 %1055, %v998
        %v1057 = vpop.permute.xlu0 %1056
        %1060 = vset.pattern.permute.xlu0 0
        %1061 = vperm.xlu0 %1060, %v999
        %v1062 = vpop.permute.xlu0 %1061
        %1065 = vset.pattern.permute.xlu0 0
        %1066 = vperm.xlu0 %1065, %v1000
        %v1067 = vpop.permute.xlu0 %1066
        %1070 = vset.pattern.permute.xlu0 0
        %1071 = vperm.xlu0 %1070, %v1001
        %v1072 = vpop.permute.xlu0 %1071
        %1075 = vset.pattern.permute.xlu0 0
        %1076 = vperm.xlu0 %1075, %v1002
        %v1077 = vpop.permute.xlu0 %1076
        %1080 = vset.pattern.permute.xlu0 0
        %1081 = vperm.xlu0 %1080, %v1003
        %v1082 = vpop.permute.xlu0 %1081
        %1085 = vset.pattern.permute.xlu0 0
        %1086 = vperm.xlu0 %1085, %v1004
        %v1087 = vpop.permute.xlu0 %1086
        %1090 = vset.pattern.permute.xlu0 0
        %1091 = vperm.xlu0 %1090, %v1005
        %v1092 = vpop.permute.xlu0 %1091
        %1095 = vset.pattern.permute.xlu0 0
        %1096 = vperm.xlu0 %1095, %v1006
        %v1097 = vpop.permute.xlu0 %1096
        %1100 = vset.pattern.permute.xlu0 0
        %1101 = vperm.xlu0 %1100, %v1007
        %v1102 = vpop.permute.xlu0 %1101
        %1105 = vset.pattern.permute.xlu0 0
        %1106 = vperm.xlu0 %1105, %v1008
        %v1107 = vpop.permute.xlu0 %1106
        %1110 = vset.pattern.permute.xlu0 0
        %1111 = vperm.xlu0 %1110, %v1009
        %v1112 = vpop.permute.xlu0 %1111
        %1115 = vset.pattern.permute.xlu0 0
        %1116 = vperm.xlu0 %1115, %v1010
        %v1117 = vpop.permute.xlu0 %1116
        %1120 = vset.pattern.permute.xlu0 0
        %1121 = vperm.xlu0 %1120, %v1011
        %v1122 = vpop.permute.xlu0 %1121
        %1125 = vset.pattern.permute.xlu0 0
        %1126 = vperm.xlu0 %1125, %v1012
        %v1127 = vpop.permute.xlu0 %1126
        %1130 = vset.pattern.permute.xlu0 0
        %1131 = vperm.xlu0 %1130, %v1013
        %v1132 = vpop.permute.xlu0 %1131
        %1135 = vset.pattern.permute.xlu0 0
        %1136 = vperm.xlu0 %1135, %v1014
        %v1137 = vpop.permute.xlu0 %1136
        %1140 = vset.pattern.permute.xlu0 0
        %1141 = vperm.xlu0 %1140, %v1015
        %v1142 = vpop.permute.xlu0 %1141
        %1145 = vset.pattern.permute.xlu0 0
        %1146 = vperm.xlu0 %1145, %v1016
        %v1147 = vpop.permute.xlu0 %1146
        %1150 = vset.pattern.permute.xlu0 0
        %1151 = vperm.xlu0 %1150, %v1017
        %v1152 = vpop.permute.xlu0 %1151
        %1155 = vset.pattern.permute.xlu0 0
        %1156 = vperm.xlu0 %1155, %v1018
        %v1157 = vpop.permute.xlu0 %1156
        %1160 = vset.pattern.permute.xlu0 0
        %1161 = vperm.xlu0 %1160, %v1019
        %v1162 = vpop.permute.xlu0 %1161
        %1165 = vset.pattern.permute.xlu0 0
        %1166 = vperm.xlu0 %1165, %v1020
        %v1167 = vpop.permute.xlu0 %1166
        %1170 = vset.pattern.permute.xlu0 0
        %1171 = vperm.xlu0 %1170, %v1021
        %v1172 = vpop.permute.xlu0 %1171
        %1175 = vset.pattern.permute.xlu0 0
        %1176 = vperm.xlu0 %1175, %v1022
        %v1177 = vpop.permute.xlu0 %1176
        %1180 = vset.pattern.permute.xlu0 0
        %1181 = vperm.xlu0 %1180, %v1023
        %v1182 = vpop.permute.xlu0 %1181
        %v1184 = vmul.f32 %v1027, %v325
        %v1185 = vmul.f32 %v1032, %v327
        %v1186 = vmul.f32 %v1037, %v330
        %v1187 = vmul.f32 %v1042, %v332
        %v1188 = vmul.f32 %v1047, %v335
        %v1189 = vmul.f32 %v1052, %v337
        %v1190 = vmul.f32 %v1057, %v340
        %v1191 = vmul.f32 %v1062, %v342
        %v1192 = vmul.f32 %v1067, %v345
        %v1193 = vmul.f32 %v1072, %v347
        %v1194 = vmul.f32 %v1077, %v350
        %v1195 = vmul.f32 %v1082, %v352
        %v1196 = vmul.f32 %v1087, %v355
        %v1197 = vmul.f32 %v1092, %v357
        %v1198 = vmul.f32 %v1097, %v360
        %v1199 = vmul.f32 %v1102, %v362
        %v1200 = vmul.f32 %v1107, %v365
        %v1201 = vmul.f32 %v1112, %v367
        %v1202 = vmul.f32 %v1117, %v370
        %v1203 = vmul.f32 %v1122, %v372
        %v1204 = vmul.f32 %v1127, %v375
        %v1205 = vmul.f32 %v1132, %v377
        %v1206 = vmul.f32 %v1137, %v380
        %v1207 = vmul.f32 %v1142, %v382
        %v1208 = vmul.f32 %v1147, %v385
        %v1209 = vmul.f32 %v1152, %v387
        %v1210 = vmul.f32 %v1157, %v390
        %v1211 = vmul.f32 %v1162, %v392
        %v1212 = vmul.f32 %v1167, %v395
        %v1213 = vmul.f32 %v1172, %v397
        %v1214 = vmul.f32 %v1177, %v400
        %v1215 = vmul.f32 %v1182, %v402
        %1216 = vset.pattern.permute.xlu0 1
        %1217 = vperm.xlu0 %1216, %v992
        %v1218 = vpop.permute.xlu0 %1217
        %1220 = vset.pattern.permute.xlu0 1
        %1221 = vperm.xlu0 %1220, %v993
        %v1222 = vpop.permute.xlu0 %1221
        %1224 = vset.pattern.permute.xlu0 1
        %1225 = vperm.xlu0 %1224, %v994
        %v1226 = vpop.permute.xlu0 %1225
        %1228 = vset.pattern.permute.xlu0 1
        %1229 = vperm.xlu0 %1228, %v995
        %v1230 = vpop.permute.xlu0 %1229
        %1232 = vset.pattern.permute.xlu0 1
        %1233 = vperm.xlu0 %1232, %v996
        %v1234 = vpop.permute.xlu0 %1233
        %1236 = vset.pattern.permute.xlu0 1
        %1237 = vperm.xlu0 %1236, %v997
        %v1238 = vpop.permute.xlu0 %1237
        %1240 = vset.pattern.permute.xlu0 1
        %1241 = vperm.xlu0 %1240, %v998
        %v1242 = vpop.permute.xlu0 %1241
        %1244 = vset.pattern.permute.xlu0 1
        %1245 = vperm.xlu0 %1244, %v999
        %v1246 = vpop.permute.xlu0 %1245
        %1248 = vset.pattern.permute.xlu0 1
        %1249 = vperm.xlu0 %1248, %v1000
        %v1250 = vpop.permute.xlu0 %1249
        %1252 = vset.pattern.permute.xlu0 1
        %1253 = vperm.xlu0 %1252, %v1001
        %v1254 = vpop.permute.xlu0 %1253
        %1256 = vset.pattern.permute.xlu0 1
        %1257 = vperm.xlu0 %1256, %v1002
        %v1258 = vpop.permute.xlu0 %1257
        %1260 = vset.pattern.permute.xlu0 1
        %1261 = vperm.xlu0 %1260, %v1003
        %v1262 = vpop.permute.xlu0 %1261
        %1264 = vset.pattern.permute.xlu0 1
        %1265 = vperm.xlu0 %1264, %v1004
        %v1266 = vpop.permute.xlu0 %1265
        %1268 = vset.pattern.permute.xlu0 1
        %1269 = vperm.xlu0 %1268, %v1005
        %v1270 = vpop.permute.xlu0 %1269
        %1272 = vset.pattern.permute.xlu0 1
        %1273 = vperm.xlu0 %1272, %v1006
        %v1274 = vpop.permute.xlu0 %1273
        %1276 = vset.pattern.permute.xlu0 1
        %1277 = vperm.xlu0 %1276, %v1007
        %v1278 = vpop.permute.xlu0 %1277
        %1280 = vset.pattern.permute.xlu0 1
        %1281 = vperm.xlu0 %1280, %v1008
        %v1282 = vpop.permute.xlu0 %1281
        %1284 = vset.pattern.permute.xlu0 1
        %1285 = vperm.xlu0 %1284, %v1009
        %v1286 = vpop.permute.xlu0 %1285
        %1288 = vset.pattern.permute.xlu0 1
        %1289 = vperm.xlu0 %1288, %v1010
        %v1290 = vpop.permute.xlu0 %1289
        %1292 = vset.pattern.permute.xlu0 1
        %1293 = vperm.xlu0 %1292, %v1011
        %v1294 = vpop.permute.xlu0 %1293
        %1296 = vset.pattern.permute.xlu0 1
        %1297 = vperm.xlu0 %1296, %v1012
        %v1298 = vpop.permute.xlu0 %1297
        %1300 = vset.pattern.permute.xlu0 1
        %1301 = vperm.xlu0 %1300, %v1013
        %v1302 = vpop.permute.xlu0 %1301
        %1304 = vset.pattern.permute.xlu0 1
        %1305 = vperm.xlu0 %1304, %v1014
        %v1306 = vpop.permute.xlu0 %1305
        %1308 = vset.pattern.permute.xlu0 1
        %1309 = vperm.xlu0 %1308, %v1015
        %v1310 = vpop.permute.xlu0 %1309
        %1312 = vset.pattern.permute.xlu0 1
        %1313 = vperm.xlu0 %1312, %v1016
        %v1314 = vpop.permute.xlu0 %1313
        %1316 = vset.pattern.permute.xlu0 1
        %1317 = vperm.xlu0 %1316, %v1017
        %v1318 = vpop.permute.xlu0 %1317
        %1320 = vset.pattern.permute.xlu0 1
        %1321 = vperm.xlu0 %1320, %v1018
        %v1322 = vpop.permute.xlu0 %1321
        %1324 = vset.pattern.permute.xlu0 1
        %1325 = vperm.xlu0 %1324, %v1019
        %v1326 = vpop.permute.xlu0 %1325
        %1328 = vset.pattern.permute.xlu0 1
        %1329 = vperm.xlu0 %1328, %v1020
        %v1330 = vpop.permute.xlu0 %1329
        %1332 = vset.pattern.permute.xlu0 1
        %1333 = vperm.xlu0 %1332, %v1021
        %v1334 = vpop.permute.xlu0 %1333
        %1336 = vset.pattern.permute.xlu0 1
        %1337 = vperm.xlu0 %1336, %v1022
        %v1338 = vpop.permute.xlu0 %1337
        %1340 = vset.pattern.permute.xlu0 1
        %1341 = vperm.xlu0 %1340, %v1023
        %v1342 = vpop.permute.xlu0 %1341
        %v1344 = vmul.f32 %v1218, %v414
        %v1345 = vmul.f32 %v1222, %v416
        %v1346 = vmul.f32 %v1226, %v419
        %v1347 = vmul.f32 %v1230, %v421
        %v1348 = vmul.f32 %v1234, %v424
        %v1349 = vmul.f32 %v1238, %v426
        %v1350 = vmul.f32 %v1242, %v429
        %v1351 = vmul.f32 %v1246, %v431
        %v1352 = vmul.f32 %v1250, %v434
        %v1353 = vmul.f32 %v1254, %v436
        %v1354 = vmul.f32 %v1258, %v439
        %v1355 = vmul.f32 %v1262, %v441
        %v1356 = vmul.f32 %v1266, %v444
        %v1357 = vmul.f32 %v1270, %v446
        %v1358 = vmul.f32 %v1274, %v449
        %v1359 = vmul.f32 %v1278, %v451
        %v1360 = vmul.f32 %v1282, %v454
        %v1361 = vmul.f32 %v1286, %v456
        %v1362 = vmul.f32 %v1290, %v459
        %v1363 = vmul.f32 %v1294, %v461
        %v1364 = vmul.f32 %v1298, %v464
        %v1365 = vmul.f32 %v1302, %v466
        %v1366 = vmul.f32 %v1306, %v469
        %v1367 = vmul.f32 %v1310, %v471
        %v1368 = vmul.f32 %v1314, %v474
        %v1369 = vmul.f32 %v1318, %v476
        %v1370 = vmul.f32 %v1322, %v479
        %v1371 = vmul.f32 %v1326, %v481
        %v1372 = vmul.f32 %v1330, %v484
        %v1373 = vmul.f32 %v1334, %v486
        %v1374 = vmul.f32 %v1338, %v489
        %v1375 = vmul.f32 %v1342, %v491
        %v1376 = vadd.f32 %v1184, %v1344
        %v1377 = vadd.f32 %v1185, %v1345
        %v1378 = vadd.f32 %v1186, %v1346
        %v1379 = vadd.f32 %v1187, %v1347
        %v1380 = vadd.f32 %v1188, %v1348
        %v1381 = vadd.f32 %v1189, %v1349
        %v1382 = vadd.f32 %v1190, %v1350
        %v1383 = vadd.f32 %v1191, %v1351
        %v1384 = vadd.f32 %v1192, %v1352
        %v1385 = vadd.f32 %v1193, %v1353
        %v1386 = vadd.f32 %v1194, %v1354
        %v1387 = vadd.f32 %v1195, %v1355
        %v1388 = vadd.f32 %v1196, %v1356
        %v1389 = vadd.f32 %v1197, %v1357
        %v1390 = vadd.f32 %v1198, %v1358
        %v1391 = vadd.f32 %v1199, %v1359
        %v1392 = vadd.f32 %v1200, %v1360
        %v1393 = vadd.f32 %v1201, %v1361
        %v1394 = vadd.f32 %v1202, %v1362
        %v1395 = vadd.f32 %v1203, %v1363
        %v1396 = vadd.f32 %v1204, %v1364
        %v1397 = vadd.f32 %v1205, %v1365
        %v1398 = vadd.f32 %v1206, %v1366
        %v1399 = vadd.f32 %v1207, %v1367
        %v1400 = vadd.f32 %v1208, %v1368
        %v1401 = vadd.f32 %v1209, %v1369
        %v1402 = vadd.f32 %v1210, %v1370
        %v1403 = vadd.f32 %v1211, %v1371
        %v1404 = vadd.f32 %v1212, %v1372
        %v1405 = vadd.f32 %v1213, %v1373
        %v1406 = vadd.f32 %v1214, %v1374
        %v1407 = vadd.f32 %v1215, %v1375
        %1408 = vset.pattern.permute.xlu0 2
        %1409 = vperm.xlu0 %1408, %v992
        %v1410 = vpop.permute.xlu0 %1409
        %1412 = vset.pattern.permute.xlu0 2
        %1413 = vperm.xlu0 %1412, %v993
        %v1414 = vpop.permute.xlu0 %1413
        %1416 = vset.pattern.permute.xlu0 2
        %1417 = vperm.xlu0 %1416, %v994
        %v1418 = vpop.permute.xlu0 %1417
        %1420 = vset.pattern.permute.xlu0 2
        %1421 = vperm.xlu0 %1420, %v995
        %v1422 = vpop.permute.xlu0 %1421
        %1424 = vset.pattern.permute.xlu0 2
        %1425 = vperm.xlu0 %1424, %v996
        %v1426 = vpop.permute.xlu0 %1425
        %1428 = vset.pattern.permute.xlu0 2
        %1429 = vperm.xlu0 %1428, %v997
        %v1430 = vpop.permute.xlu0 %1429
        %1432 = vset.pattern.permute.xlu0 2
        %1433 = vperm.xlu0 %1432, %v998
        %v1434 = vpop.permute.xlu0 %1433
        %1436 = vset.pattern.permute.xlu0 2
        %1437 = vperm.xlu0 %1436, %v999
        %v1438 = vpop.permute.xlu0 %1437
        %1440 = vset.pattern.permute.xlu0 2
        %1441 = vperm.xlu0 %1440, %v1000
        %v1442 = vpop.permute.xlu0 %1441
        %1444 = vset.pattern.permute.xlu0 2
        %1445 = vperm.xlu0 %1444, %v1001
        %v1446 = vpop.permute.xlu0 %1445
        %1448 = vset.pattern.permute.xlu0 2
        %1449 = vperm.xlu0 %1448, %v1002
        %v1450 = vpop.permute.xlu0 %1449
        %1452 = vset.pattern.permute.xlu0 2
        %1453 = vperm.xlu0 %1452, %v1003
        %v1454 = vpop.permute.xlu0 %1453
        %1456 = vset.pattern.permute.xlu0 2
        %1457 = vperm.xlu0 %1456, %v1004
        %v1458 = vpop.permute.xlu0 %1457
        %1460 = vset.pattern.permute.xlu0 2
        %1461 = vperm.xlu0 %1460, %v1005
        %v1462 = vpop.permute.xlu0 %1461
        %1464 = vset.pattern.permute.xlu0 2
        %1465 = vperm.xlu0 %1464, %v1006
        %v1466 = vpop.permute.xlu0 %1465
        %1468 = vset.pattern.permute.xlu0 2
        %1469 = vperm.xlu0 %1468, %v1007
        %v1470 = vpop.permute.xlu0 %1469
        %1472 = vset.pattern.permute.xlu0 2
        %1473 = vperm.xlu0 %1472, %v1008
        %v1474 = vpop.permute.xlu0 %1473
        %1476 = vset.pattern.permute.xlu0 2
        %1477 = vperm.xlu0 %1476, %v1009
        %v1478 = vpop.permute.xlu0 %1477
        %1480 = vset.pattern.permute.xlu0 2
        %1481 = vperm.xlu0 %1480, %v1010
        %v1482 = vpop.permute.xlu0 %1481
        %1484 = vset.pattern.permute.xlu0 2
        %1485 = vperm.xlu0 %1484, %v1011
        %v1486 = vpop.permute.xlu0 %1485
        %1488 = vset.pattern.permute.xlu0 2
        %1489 = vperm.xlu0 %1488, %v1012
        %v1490 = vpop.permute.xlu0 %1489
        %1492 = vset.pattern.permute.xlu0 2
        %1493 = vperm.xlu0 %1492, %v1013
        %v1494 = vpop.permute.xlu0 %1493
        %1496 = vset.pattern.permute.xlu0 2
        %1497 = vperm.xlu0 %1496, %v1014
        %v1498 = vpop.permute.xlu0 %1497
        %1500 = vset.pattern.permute.xlu0 2
        %1501 = vperm.xlu0 %1500, %v1015
        %v1502 = vpop.permute.xlu0 %1501
        %1504 = vset.pattern.permute.xlu0 2
        %1505 = vperm.xlu0 %1504, %v1016
        %v1506 = vpop.permute.xlu0 %1505
        %1508 = vset.pattern.permute.xlu0 2
        %1509 = vperm.xlu0 %1508, %v1017
        %v1510 = vpop.permute.xlu0 %1509
        %1512 = vset.pattern.permute.xlu0 2
        %1513 = vperm.xlu0 %1512, %v1018
        %v1514 = vpop.permute.xlu0 %1513
        %1516 = vset.pattern.permute.xlu0 2
        %1517 = vperm.xlu0 %1516, %v1019
        %v1518 = vpop.permute.xlu0 %1517
        %1520 = vset.pattern.permute.xlu0 2
        %1521 = vperm.xlu0 %1520, %v1020
        %v1522 = vpop.permute.xlu0 %1521
        %1524 = vset.pattern.permute.xlu0 2
        %1525 = vperm.xlu0 %1524, %v1021
        %v1526 = vpop.permute.xlu0 %1525
        %1528 = vset.pattern.permute.xlu0 2
        %1529 = vperm.xlu0 %1528, %v1022
        %v1530 = vpop.permute.xlu0 %1529
        %1532 = vset.pattern.permute.xlu0 2
        %1533 = vperm.xlu0 %1532, %v1023
        %v1534 = vpop.permute.xlu0 %1533
        %v1536 = vmul.f32 %v1410, %v503
        %v1537 = vmul.f32 %v1414, %v505
        %v1538 = vmul.f32 %v1418, %v508
        %v1539 = vmul.f32 %v1422, %v510
        %v1540 = vmul.f32 %v1426, %v513
        %v1541 = vmul.f32 %v1430, %v515
        %v1542 = vmul.f32 %v1434, %v518
        %v1543 = vmul.f32 %v1438, %v520
        %v1544 = vmul.f32 %v1442, %v523
        %v1545 = vmul.f32 %v1446, %v525
        %v1546 = vmul.f32 %v1450, %v528
        %v1547 = vmul.f32 %v1454, %v530
        %v1548 = vmul.f32 %v1458, %v533
        %v1549 = vmul.f32 %v1462, %v535
        %v1550 = vmul.f32 %v1466, %v538
        %v1551 = vmul.f32 %v1470, %v540
        %v1552 = vmul.f32 %v1474, %v543
        %v1553 = vmul.f32 %v1478, %v545
        %v1554 = vmul.f32 %v1482, %v548
        %v1555 = vmul.f32 %v1486, %v550
        %v1556 = vmul.f32 %v1490, %v553
        %v1557 = vmul.f32 %v1494, %v555
        %v1558 = vmul.f32 %v1498, %v558
        %v1559 = vmul.f32 %v1502, %v560
        %v1560 = vmul.f32 %v1506, %v563
        %v1561 = vmul.f32 %v1510, %v565
        %v1562 = vmul.f32 %v1514, %v568
        %v1563 = vmul.f32 %v1518, %v570
        %v1564 = vmul.f32 %v1522, %v573
        %v1565 = vmul.f32 %v1526, %v575
        %v1566 = vmul.f32 %v1530, %v578
        %v1567 = vmul.f32 %v1534, %v580
        %v1568 = vadd.f32 %v1376, %v1536
        %v1569 = vadd.f32 %v1377, %v1537
        %v1570 = vadd.f32 %v1378, %v1538
        %v1571 = vadd.f32 %v1379, %v1539
        %v1572 = vadd.f32 %v1380, %v1540
        %v1573 = vadd.f32 %v1381, %v1541
        %v1574 = vadd.f32 %v1382, %v1542
        %v1575 = vadd.f32 %v1383, %v1543
        %v1576 = vadd.f32 %v1384, %v1544
        %v1577 = vadd.f32 %v1385, %v1545
        %v1578 = vadd.f32 %v1386, %v1546
        %v1579 = vadd.f32 %v1387, %v1547
        %v1580 = vadd.f32 %v1388, %v1548
        %v1581 = vadd.f32 %v1389, %v1549
        %v1582 = vadd.f32 %v1390, %v1550
        %v1583 = vadd.f32 %v1391, %v1551
        %v1584 = vadd.f32 %v1392, %v1552
        %v1585 = vadd.f32 %v1393, %v1553
        %v1586 = vadd.f32 %v1394, %v1554
        %v1587 = vadd.f32 %v1395, %v1555
        %v1588 = vadd.f32 %v1396, %v1556
        %v1589 = vadd.f32 %v1397, %v1557
        %v1590 = vadd.f32 %v1398, %v1558
        %v1591 = vadd.f32 %v1399, %v1559
        %v1592 = vadd.f32 %v1400, %v1560
        %v1593 = vadd.f32 %v1401, %v1561
        %v1594 = vadd.f32 %v1402, %v1562
        %v1595 = vadd.f32 %v1403, %v1563
        %v1596 = vadd.f32 %v1404, %v1564
        %v1597 = vadd.f32 %v1405, %v1565
        %v1598 = vadd.f32 %v1406, %v1566
        %v1599 = vadd.f32 %v1407, %v1567
        %1600 = vst [vmem:[%s149] sm:$0xff] %v1568
        %1601 = vst [vmem:[%s149 + $0x8] sm:$0xff] %v1569
        %1602 = vst [vmem:[%s149 + $0x10] sm:$0xff] %v1570
        %1603 = vst [vmem:[%s149 + $0x18] sm:$0xff] %v1571
        %1604 = vst [vmem:[%s149 + $0x20] sm:$0xff] %v1572
        %1605 = vst [vmem:[%s149 + $0x28] sm:$0xff] %v1573
        %1606 = vst [vmem:[%s149 + $0x30] sm:$0xff] %v1574
        %1607 = vst [vmem:[%s149 + $0x38] sm:$0xff] %v1575
        %1608 = vst [vmem:[%s149 + $0x40] sm:$0xff] %v1576
        %1609 = vst [vmem:[%s149 + $0x48] sm:$0xff] %v1577
        %1610 = vst [vmem:[%s149 + $0x50] sm:$0xff] %v1578
        %1611 = vst [vmem:[%s149 + $0x58] sm:$0xff] %v1579
        %1612 = vst [vmem:[%s149 + $0x60] sm:$0xff] %v1580
        %1613 = vst [vmem:[%s149 + $0x68] sm:$0xff] %v1581
        %1614 = vst [vmem:[%s149 + $0x70] sm:$0xff] %v1582
        %1615 = vst [vmem:[%s149 + $0x78] sm:$0xff] %v1583
        %1616 = vst [vmem:[%s149 + $0x80] sm:$0xff] %v1584
        %1617 = vst [vmem:[%s149 + $0x88] sm:$0xff] %v1585
        %1618 = vst [vmem:[%s149 + $0x90] sm:$0xff] %v1586
        %1619 = vst [vmem:[%s149 + $0x98] sm:$0xff] %v1587
        %1620 = vst [vmem:[%s149 + $0xa0] sm:$0xff] %v1588
        %1621 = vst [vmem:[%s149 + $0xa8] sm:$0xff] %v1589
        %1622 = vst [vmem:[%s149 + $0xb0] sm:$0xff] %v1590
        %1623 = vst [vmem:[%s149 + $0xb8] sm:$0xff] %v1591
        %1624 = vst [vmem:[%s149 + $0xc0] sm:$0xff] %v1592
        %1625 = vst [vmem:[%s149 + $0xc8] sm:$0xff] %v1593
        %1626 = vst [vmem:[%s149 + $0xd0] sm:$0xff] %v1594
        %1627 = vst [vmem:[%s149 + $0xd8] sm:$0xff] %v1595
        %1628 = vst [vmem:[%s149 + $0xe0] sm:$0xff] %v1596
        %1629 = vst [vmem:[%s149 + $0xe8] sm:$0xff] %v1597
        %1630 = vst [vmem:[%s149 + $0xf0] sm:$0xff] %v1598
        %1631 = vst [vmem:[%s149 + $0xf8] sm:$0xff] %v1599
        %s1632 = sand.u32 %s71, 1
        %s1633 = scalar_lea.sflag [#allocation3], %s1632
        %s1634 = sand.u32 %s71, 1
        %s1635 = smul.addr %s1634, 256
        %s1636 = scalar_lea.vmem [#allocation2], %s1635
        // Predicated region
        $region29: #{tpu_custom_call.1} parent=27 // pred_check
          %p1637 = pneg %p81
        $region30: #{tpu_custom_call.1} parent=27 // pred_check_branch
          %1639 = sbr.rel (%p1637) target = $region32
        $region31: #{tpu_custom_call.1} parent=27 // pred_region
          %s1640 = smul.u32 32, %s16
          %s1641 = ssub.s32 125, %s1640
          %p1642 = scmp.lt.s32.totalorder %s1641, 32
          %s1643 = scalar_select %p1642, %s1641, 32
          %s1644 = smul.u32 8, %s1643
          %s1645 = ssub.s32 256, %s1644
          %s1646 = sshll.u32 %s1645, 4
          %1647 = vsyncadd %s1633, %s1646
          %p1648 = scmp.ne.s32.totalorder 0, %s1644
          %s1649 = smul.addr %s1640, 8
          %s1650 = scalar_lea.hbm %s2, %s1649
          %s1651 = smul.u32 8, %s1643
          %s1652 = sshll.u32 %s1636, 4
          %s1653 = int_to_ptr.vmem [resolvable:$true] %s1652
          %s1654 = sshll.u32 %s1650, 4
          %s1655 = int_to_ptr.hbm [resolvable:$true] %s1654
          %s1656 = sshll.u32 %s1651, 4
          %1660 = dma.vmem_to_hbm [thread:$0]  (%p1648), %s1653, %s1656, %s1655, %s1633, 128, 128, 8
        $region32: #{tpu_custom_call.1} parent=27 // pred_fallthru
          _
      $region28: #{tpu_custom_call.1} parent=5 // pred_fallthru
        _
      %p1661 = scmp.le.s32.totalorder 2, %s11
      // Predicated region
      $region33: #{tpu_custom_call.1} parent=5 // pred_check
        %p1662 = pneg %p1661
      $region34: #{tpu_custom_call.1} parent=5 // pred_check_branch
        %1664 = sbr.rel (%p1662) target = $region36
      $region35: #{tpu_custom_call.1} parent=5 // pred_region
        %s1665 = ssub.s32 %s11, 2
        // Predicated region
        $region37: #{tpu_custom_call.1} parent=35 // pred_check
          %p1666 = pneg %p87
        $region38: #{tpu_custom_call.1} parent=35 // pred_check_branch
          %1668 = sbr.rel (%p1666) target = $region40
        $region39: #{tpu_custom_call.1} parent=35 // pred_region
          %s1669 = sand.u32 %s72, 1
          %s1670 = scalar_lea.sflag [#allocation3], %s1669
          %s1671 = sand.u32 %s72, 1
          %s1672 = smul.addr %s1671, 256
          %s1673 = scalar_lea.vmem [#allocation2], %s1672
          %1675 = dma.done %s1670, 4096
        $region40: #{tpu_custom_call.1} parent=35 // pred_fallthru
          _
      $region36: #{tpu_custom_call.1} parent=5 // pred_fallthru
        _
    $region6: #{tpu_custom_call.1} parent=1 // loop_footer
      %s15 = sadd.s32 1, %s11
    $region7: #{tpu_custom_call.1} parent=1 // loop_footer_branch
      %10 = sbr.rel target = $region3
    $region8: #{tpu_custom_call.1} parent=1 // loop_exit
      _
    %1676 = vsyncpa [#allocation3], 1
    %s1677 = scalar_lea.sflag [#allocation3], 1
    %1678 = vsyncpa %s1677, 1

</llo_original>
